<compile_context>
chip_gen: v7x
topology: tpu7x:2x2x1
jax: 0.10.0
libtpu: 0.0.40
codegen_flags: <defaults>
</compile_context>

<pallas_src>
import jax
import jax.numpy as jnp
from jax.experimental import pallas as pl
from jax.experimental.pallas import tpu as pltpu

NUM_LAYERS = 8      # 4 encoder + 4 decoder linears
F_PAD = 128         # every feature dim is zero-padded to one lane-dense width


def _round_up(n, m):
    return ((n + m - 1) // m) * m


# ----------------------------------------------------------------------------
# Kernel: one fused VAE forward over a (TB, 128) batch tile.
# ----------------------------------------------------------------------------
def vae_kernel(x_ref, eps_ref, w_ref, b_ref, out_ref):
    # x_ref   : (TB, F_PAD)  bf16   zero-padded input rows
    # eps_ref : (TB, F_PAD)  f32    zero-padded N(0,1) noise (latent lanes only)
    # w_ref   : (8, F_PAD, F_PAD) bf16  pre-transposed, zero-padded weights
    # b_ref   : (8, F_PAD)   f32        zero-padded biases
    # out_ref : (TB, F_PAD)  f32        lane-dense output (valid lanes sliced outside)
    b_all = b_ref[...]                                   # (8, F_PAD) f32, tiny

    def linear(h_bf16, l):
        # bf16 operands on the MXU, f32 accumulate, f32 bias add.
        return jnp.dot(h_bf16, w_ref[l],
                       preferred_element_type=jnp.float32) + b_all[l]

    # ---- encoder ----
    h = x_ref[...]                                       # bf16
    for l in range(3):
        h = jnp.maximum(linear(h, l), 0.0).astype(jnp.bfloat16)
    mu = linear(h, 3)                                    # f32
    sigma = jnp.exp(mu)                                  # exp(linear4(h)) == exp(mu)
    z = (mu + sigma * eps_ref[...]).astype(jnp.bfloat16)

    # ---- decoder ----
    h = z
    for l in range(4, 7):
        h = jnp.maximum(linear(h, l), 0.0).astype(jnp.bfloat16)
    out_ref[...] = linear(h, 7)                          # f32, full 128-lane store


# ----------------------------------------------------------------------------
# Parameter construction / packing
# ----------------------------------------------------------------------------
def init_linear(key, in_dim, out_dim):
    """torch-like init: U(-1/sqrt(in), 1/sqrt(in)). Returns (W_t (in,out), b (out,))."""
    kw, kb = jax.random.split(key)
    bound = 1.0 / jnp.sqrt(jnp.float32(in_dim))
    w = jax.random.uniform(kw, (out_dim, in_dim), jnp.float32, -bound, bound)
    b = jax.random.uniform(kb, (out_dim,), jnp.float32, -bound, bound)
    return w.T, b


def make_params(key, layers_size, latent_dim):
    ks = jax.random.split(key, 8)
    e1 = init_linear(ks[0], layers_size[0], layers_size[1])
    e2 = init_linear(ks[1], layers_size[1], layers_size[2])
    e3 = init_linear(ks[2], layers_size[2], layers_size[3])
    e4 = init_linear(ks[3], layers_size[3], latent_dim)
    d1 = init_linear(ks[4], latent_dim, layers_size[3])
    d2 = init_linear(ks[5], layers_size[3], layers_size[2])
    d3 = init_linear(ks[6], layers_size[2], layers_size[1])
    d4 = init_linear(ks[7], layers_size[1], layers_size[0])
    return (e1, e2, e3, e4, d1, d2, d3, d4)


def pack_params(params):
    """Pack 8 (W_t, b) pairs into one bf16 weight slab and one f32 bias slab."""
    assert len(params) == NUM_LAYERS
    w_slab = jnp.zeros((NUM_LAYERS, F_PAD, F_PAD), jnp.float32)
    b_slab = jnp.zeros((NUM_LAYERS, F_PAD), jnp.float32)
    for l, (w, b) in enumerate(params):
        din, dout = w.shape
        assert din <= F_PAD and dout <= F_PAD
        w_slab = w_slab.at[l, :din, :dout].set(w)
        b_slab = b_slab.at[l, :dout].set(b)
    return w_slab.astype(jnp.bfloat16), b_slab


# ----------------------------------------------------------------------------
# Wrapper
# ----------------------------------------------------------------------------
def vae_forward(x, eps, w_slab, b_slab, out_dim, *, block_batch=256):
    B, in_dim = x.shape
    latent_dim = eps.shape[1]

    block_batch = max(8, _round_up(block_batch, 8))
    b_min = max(_round_up(B, 8), 8)
    tb = min(block_batch, b_min)
    b_pad = _round_up(b_min, tb)

    # Zero-pad batch rows and feature lanes; cast x to bf16 (halves input DMA).
    x_p = jnp.zeros((b_pad, F_PAD), jnp.bfloat16).at[:B, :in_dim].set(
        x.astype(jnp.bfloat16))
    eps_p = jnp.zeros((b_pad, F_PAD), jnp.float32).at[:B, :latent_dim].set(
        eps.astype(jnp.float32))

    out_p = pl.pallas_call(
        vae_kernel,
        out_shape=jax.ShapeDtypeStruct((b_pad, F_PAD), jnp.float32),
        grid=(b_pad // tb,),
        in_specs=[
            pl.BlockSpec((tb, F_PAD), lambda i: (i, 0)),                 # x tile
            pl.BlockSpec((tb, F_PAD), lambda i: (i, 0)),                 # eps tile
            pl.BlockSpec((NUM_LAYERS, F_PAD, F_PAD), lambda i: (0, 0, 0)),  # weights (resident)
            pl.BlockSpec((NUM_LAYERS, F_PAD), lambda i: (0, 0)),            # biases (resident)
        ],
        out_specs=pl.BlockSpec((tb, F_PAD), lambda i: (i, 0)),
        compiler_params=pltpu.CompilerParams(
            dimension_semantics=("parallel",)),
    )(x_p, eps_p, w_slab, b_slab)

    return out_p[:B, :out_dim]


# ----------------------------------------------------------------------------
# Pure-JAX reference (emulates the kernel's bf16-operand / f32-accumulate math)
# ----------------------------------------------------------------------------
def vae_reference(x, eps, params):
    bf = jnp.bfloat16

    def lin(h, wb):
        w, b = wb
        return jnp.dot(h.astype(bf), w.astype(bf),
                       preferred_element_type=jnp.float32) + b

    e1, e2, e3, e4, d1, d2, d3, d4 = params
    h = x
    for wb in (e1, e2, e3):
        h = jnp.maximum(lin(h, wb), 0.0)
    mu = lin(h, e4)
    z = mu + jnp.exp(mu) * eps
    h = z
    for wb in (d1, d2, d3):
        h = jnp.maximum(lin(h, wb), 0.0)
    return lin(h, d4)


if __name__ == "__main__":
    layers_size = [32, 24, 16, 8]
    latent_dim = 4

    key = jax.random.PRNGKey(0)
    kp, kx1, ke1, kx2, ke2 = jax.random.split(key, 5)

    params = make_params(kp, layers_size, latent_dim)
    w_slab, b_slab = pack_params(params)

    # Case 1: small batch, single grid step (default 256-row tile).
    b1 = 64
    x1 = jax.random.normal(kx1, (b1, layers_size[0]), jnp.float32)
    e1 = jax.random.normal(ke1, (b1, latent_dim), jnp.float32)
    o1 = jax.block_until_ready(vae_forward(x1, e1, w_slab, b_slab, layers_size[0]))
    r1 = vae_reference(x1, e1, params)
    assert o1.shape == (b1, layers_size[0])
    assert jnp.allclose(o1, r1, atol=1e-2, rtol=1e-2), float(jnp.max(jnp.abs(o1 - r1)))

    # Case 2: ragged batch + multi-step grid (exercises pipelining + padding).
    b2 = 200
    x2 = jax.random.normal(kx2, (b2, layers_size[0]), jnp.float32)
    e2 = jax.random.normal(ke2, (b2, latent_dim), jnp.float32)
    o2 = jax.block_until_ready(
        vae_forward(x2, e2, w_slab, b_slab, layers_size[0], block_batch=64))
    r2 = vae_reference(x2, e2, params)
    assert o2.shape == (b2, layers_size[0])
    assert jnp.allclose(o2, r2, atol=1e-2, rtol=1e-2), float(jnp.max(jnp.abs(o2 - r2)))

    print("KERNEL_OK")
</pallas_src>

<mosaic_0001>
module attributes {stable_mosaic.version = 11 : i64} {
  func.func @vae_kernel(%arg0: i32, %arg1: memref<64x128xbf16, #tpu.memory_space<vmem>>, %arg2: memref<64x128xf32, #tpu.memory_space<vmem>>, %arg3: memref<8x128x128xbf16, #tpu.memory_space<vmem>>, %arg4: memref<8x128xf32, #tpu.memory_space<vmem>>, %arg5: memref<64x128xf32, #tpu.memory_space<vmem>>) attributes {dimension_semantics = [#tpu.dimension_semantics<parallel>], iteration_bounds = array<i64: 1>, scalar_prefetch = 0 : i64, scratch_operands = 0 : i64, tpu.core_type = #tpu.core_type<tc>, window_params = [{transform_indices = @transform_0, window_bounds = array<i64: 64, 128>}, {transform_indices = @transform_1, window_bounds = array<i64: 64, 128>}, {pipeline_mode = #tpu.pipeline_mode<synchronous>, transform_indices = @transform_2, window_bounds = array<i64: 8, 128, 128>}, {pipeline_mode = #tpu.pipeline_mode<synchronous>, transform_indices = @transform_3, window_bounds = array<i64: 8, 128>}, {transform_indices = @transform_4, window_bounds = array<i64: 64, 128>}]} {
    %c0 = arith.constant 0 : index
    %c0_0 = arith.constant 0 : index
    %0 = vector.load %arg4[%c0, %c0_0] : memref<8x128xf32, #tpu.memory_space<vmem>>, vector<8x128xf32>
    %c0_1 = arith.constant 0 : index
    %c0_2 = arith.constant 0 : index
    %1 = vector.load %arg1[%c0_1, %c0_2] : memref<64x128xbf16, #tpu.memory_space<vmem>>, vector<64x128xbf16>
    %c0_3 = arith.constant 0 : index
    %c0_4 = arith.constant 0 : index
    %c0_5 = arith.constant 0 : index
    %2 = vector.load %arg3[%c0_3, %c0_4, %c0_5] : memref<8x128x128xbf16, #tpu.memory_space<vmem>>, vector<1x128x128xbf16>
    %3 = vector.shape_cast %2 : vector<1x128x128xbf16> to vector<128x128xbf16>
    %cst = arith.constant dense<0.000000e+00> : vector<64x128xf32>
    %4 = tpu.matmul %1, %3, %cst {dimension_numbers = #tpu.dot_dimension_numbers<[1], [0], [0], [1], [0, 0, 1, 1], [], []>} : vector<64x128xbf16>, vector<128x128xbf16>, vector<64x128xf32> -> vector<64x128xf32>
    %5 = vector.extract_strided_slice %0 {offsets = [0, 0], sizes = [1, 128], strides = [1, 1]} : vector<8x128xf32> to vector<1x128xf32>
    %6 = vector.shape_cast %5 : vector<1x128xf32> to vector<128xf32>
    %7 = vector.shape_cast %6 : vector<128xf32> to vector<1x128xf32>
    %8 = vector.broadcast %7 : vector<1x128xf32> to vector<64x128xf32>
    %9 = arith.addf %4, %8 : vector<64x128xf32>
    %cst_6 = arith.constant 0.000000e+00 : f32
    %10 = vector.broadcast %cst_6 : f32 to vector<64x128xf32>
    %11 = arith.maximumf %9, %10 : vector<64x128xf32>
    %12 = arith.truncf %11 : vector<64x128xf32> to vector<64x128xbf16>
    %c1 = arith.constant 1 : index
    %c0_7 = arith.constant 0 : index
    %c0_8 = arith.constant 0 : index
    %13 = vector.load %arg3[%c1, %c0_7, %c0_8] : memref<8x128x128xbf16, #tpu.memory_space<vmem>>, vector<1x128x128xbf16>
    %14 = vector.shape_cast %13 : vector<1x128x128xbf16> to vector<128x128xbf16>
    %cst_9 = arith.constant dense<0.000000e+00> : vector<64x128xf32>
    %15 = tpu.matmul %12, %14, %cst_9 {dimension_numbers = #tpu.dot_dimension_numbers<[1], [0], [0], [1], [0, 0, 1, 1], [], []>} : vector<64x128xbf16>, vector<128x128xbf16>, vector<64x128xf32> -> vector<64x128xf32>
    %16 = vector.extract_strided_slice %0 {offsets = [1, 0], sizes = [1, 128], strides = [1, 1]} : vector<8x128xf32> to vector<1x128xf32>
    %17 = vector.shape_cast %16 : vector<1x128xf32> to vector<128xf32>
    %18 = vector.shape_cast %17 : vector<128xf32> to vector<1x128xf32>
    %19 = vector.broadcast %18 : vector<1x128xf32> to vector<64x128xf32>
    %20 = arith.addf %15, %19 : vector<64x128xf32>
    %cst_10 = arith.constant 0.000000e+00 : f32
    %21 = vector.broadcast %cst_10 : f32 to vector<64x128xf32>
    %22 = arith.maximumf %20, %21 : vector<64x128xf32>
    %23 = arith.truncf %22 : vector<64x128xf32> to vector<64x128xbf16>
    %c2 = arith.constant 2 : index
    %c0_11 = arith.constant 0 : index
    %c0_12 = arith.constant 0 : index
    %24 = vector.load %arg3[%c2, %c0_11, %c0_12] : memref<8x128x128xbf16, #tpu.memory_space<vmem>>, vector<1x128x128xbf16>
    %25 = vector.shape_cast %24 : vector<1x128x128xbf16> to vector<128x128xbf16>
    %cst_13 = arith.constant dense<0.000000e+00> : vector<64x128xf32>
    %26 = tpu.matmul %23, %25, %cst_13 {dimension_numbers = #tpu.dot_dimension_numbers<[1], [0], [0], [1], [0, 0, 1, 1], [], []>} : vector<64x128xbf16>, vector<128x128xbf16>, vector<64x128xf32> -> vector<64x128xf32>
    %27 = vector.extract_strided_slice %0 {offsets = [2, 0], sizes = [1, 128], strides = [1, 1]} : vector<8x128xf32> to vector<1x128xf32>
    %28 = vector.shape_cast %27 : vector<1x128xf32> to vector<128xf32>
    %29 = vector.shape_cast %28 : vector<128xf32> to vector<1x128xf32>
    %30 = vector.broadcast %29 : vector<1x128xf32> to vector<64x128xf32>
    %31 = arith.addf %26, %30 : vector<64x128xf32>
    %cst_14 = arith.constant 0.000000e+00 : f32
    %32 = vector.broadcast %cst_14 : f32 to vector<64x128xf32>
    %33 = arith.maximumf %31, %32 : vector<64x128xf32>
    %34 = arith.truncf %33 : vector<64x128xf32> to vector<64x128xbf16>
    %c3 = arith.constant 3 : index
    %c0_15 = arith.constant 0 : index
    %c0_16 = arith.constant 0 : index
    %35 = vector.load %arg3[%c3, %c0_15, %c0_16] : memref<8x128x128xbf16, #tpu.memory_space<vmem>>, vector<1x128x128xbf16>
    %36 = vector.shape_cast %35 : vector<1x128x128xbf16> to vector<128x128xbf16>
    %cst_17 = arith.constant dense<0.000000e+00> : vector<64x128xf32>
    %37 = tpu.matmul %34, %36, %cst_17 {dimension_numbers = #tpu.dot_dimension_numbers<[1], [0], [0], [1], [0, 0, 1, 1], [], []>} : vector<64x128xbf16>, vector<128x128xbf16>, vector<64x128xf32> -> vector<64x128xf32>
    %38 = vector.extract_strided_slice %0 {offsets = [3, 0], sizes = [1, 128], strides = [1, 1]} : vector<8x128xf32> to vector<1x128xf32>
    %39 = vector.shape_cast %38 : vector<1x128xf32> to vector<128xf32>
    %40 = vector.shape_cast %39 : vector<128xf32> to vector<1x128xf32>
    %41 = vector.broadcast %40 : vector<1x128xf32> to vector<64x128xf32>
    %42 = arith.addf %37, %41 : vector<64x128xf32>
    %43 = math.exp %42 : vector<64x128xf32>
    %c0_18 = arith.constant 0 : index
    %c0_19 = arith.constant 0 : index
    %44 = vector.load %arg2[%c0_18, %c0_19] : memref<64x128xf32, #tpu.memory_space<vmem>>, vector<64x128xf32>
    %45 = arith.mulf %43, %44 : vector<64x128xf32>
    %46 = arith.addf %42, %45 : vector<64x128xf32>
    %47 = arith.truncf %46 : vector<64x128xf32> to vector<64x128xbf16>
    %c4 = arith.constant 4 : index
    %c0_20 = arith.constant 0 : index
    %c0_21 = arith.constant 0 : index
    %48 = vector.load %arg3[%c4, %c0_20, %c0_21] : memref<8x128x128xbf16, #tpu.memory_space<vmem>>, vector<1x128x128xbf16>
    %49 = vector.shape_cast %48 : vector<1x128x128xbf16> to vector<128x128xbf16>
    %cst_22 = arith.constant dense<0.000000e+00> : vector<64x128xf32>
    %50 = tpu.matmul %47, %49, %cst_22 {dimension_numbers = #tpu.dot_dimension_numbers<[1], [0], [0], [1], [0, 0, 1, 1], [], []>} : vector<64x128xbf16>, vector<128x128xbf16>, vector<64x128xf32> -> vector<64x128xf32>
    %51 = vector.extract_strided_slice %0 {offsets = [4, 0], sizes = [1, 128], strides = [1, 1]} : vector<8x128xf32> to vector<1x128xf32>
    %52 = vector.shape_cast %51 : vector<1x128xf32> to vector<128xf32>
    %53 = vector.shape_cast %52 : vector<128xf32> to vector<1x128xf32>
    %54 = vector.broadcast %53 : vector<1x128xf32> to vector<64x128xf32>
    %55 = arith.addf %50, %54 : vector<64x128xf32>
    %cst_23 = arith.constant 0.000000e+00 : f32
    %56 = vector.broadcast %cst_23 : f32 to vector<64x128xf32>
    %57 = arith.maximumf %55, %56 : vector<64x128xf32>
    %58 = arith.truncf %57 : vector<64x128xf32> to vector<64x128xbf16>
    %c5 = arith.constant 5 : index
    %c0_24 = arith.constant 0 : index
    %c0_25 = arith.constant 0 : index
    %59 = vector.load %arg3[%c5, %c0_24, %c0_25] : memref<8x128x128xbf16, #tpu.memory_space<vmem>>, vector<1x128x128xbf16>
    %60 = vector.shape_cast %59 : vector<1x128x128xbf16> to vector<128x128xbf16>
    %cst_26 = arith.constant dense<0.000000e+00> : vector<64x128xf32>
    %61 = tpu.matmul %58, %60, %cst_26 {dimension_numbers = #tpu.dot_dimension_numbers<[1], [0], [0], [1], [0, 0, 1, 1], [], []>} : vector<64x128xbf16>, vector<128x128xbf16>, vector<64x128xf32> -> vector<64x128xf32>
    %62 = vector.extract_strided_slice %0 {offsets = [5, 0], sizes = [1, 128], strides = [1, 1]} : vector<8x128xf32> to vector<1x128xf32>
    %63 = vector.shape_cast %62 : vector<1x128xf32> to vector<128xf32>
    %64 = vector.shape_cast %63 : vector<128xf32> to vector<1x128xf32>
    %65 = vector.broadcast %64 : vector<1x128xf32> to vector<64x128xf32>
    %66 = arith.addf %61, %65 : vector<64x128xf32>
    %cst_27 = arith.constant 0.000000e+00 : f32
    %67 = vector.broadcast %cst_27 : f32 to vector<64x128xf32>
    %68 = arith.maximumf %66, %67 : vector<64x128xf32>
    %69 = arith.truncf %68 : vector<64x128xf32> to vector<64x128xbf16>
    %c6 = arith.constant 6 : index
    %c0_28 = arith.constant 0 : index
    %c0_29 = arith.constant 0 : index
    %70 = vector.load %arg3[%c6, %c0_28, %c0_29] : memref<8x128x128xbf16, #tpu.memory_space<vmem>>, vector<1x128x128xbf16>
    %71 = vector.shape_cast %70 : vector<1x128x128xbf16> to vector<128x128xbf16>
    %cst_30 = arith.constant dense<0.000000e+00> : vector<64x128xf32>
    %72 = tpu.matmul %69, %71, %cst_30 {dimension_numbers = #tpu.dot_dimension_numbers<[1], [0], [0], [1], [0, 0, 1, 1], [], []>} : vector<64x128xbf16>, vector<128x128xbf16>, vector<64x128xf32> -> vector<64x128xf32>
    %73 = vector.extract_strided_slice %0 {offsets = [6, 0], sizes = [1, 128], strides = [1, 1]} : vector<8x128xf32> to vector<1x128xf32>
    %74 = vector.shape_cast %73 : vector<1x128xf32> to vector<128xf32>
    %75 = vector.shape_cast %74 : vector<128xf32> to vector<1x128xf32>
    %76 = vector.broadcast %75 : vector<1x128xf32> to vector<64x128xf32>
    %77 = arith.addf %72, %76 : vector<64x128xf32>
    %cst_31 = arith.constant 0.000000e+00 : f32
    %78 = vector.broadcast %cst_31 : f32 to vector<64x128xf32>
    %79 = arith.maximumf %77, %78 : vector<64x128xf32>
    %80 = arith.truncf %79 : vector<64x128xf32> to vector<64x128xbf16>
    %c7 = arith.constant 7 : index
    %c0_32 = arith.constant 0 : index
    %c0_33 = arith.constant 0 : index
    %81 = vector.load %arg3[%c7, %c0_32, %c0_33] : memref<8x128x128xbf16, #tpu.memory_space<vmem>>, vector<1x128x128xbf16>
    %82 = vector.shape_cast %81 : vector<1x128x128xbf16> to vector<128x128xbf16>
    %cst_34 = arith.constant dense<0.000000e+00> : vector<64x128xf32>
    %83 = tpu.matmul %80, %82, %cst_34 {dimension_numbers = #tpu.dot_dimension_numbers<[1], [0], [0], [1], [0, 0, 1, 1], [], []>} : vector<64x128xbf16>, vector<128x128xbf16>, vector<64x128xf32> -> vector<64x128xf32>
    %84 = vector.extract_strided_slice %0 {offsets = [7, 0], sizes = [1, 128], strides = [1, 1]} : vector<8x128xf32> to vector<1x128xf32>
    %85 = vector.shape_cast %84 : vector<1x128xf32> to vector<128xf32>
    %86 = vector.shape_cast %85 : vector<128xf32> to vector<1x128xf32>
    %87 = vector.broadcast %86 : vector<1x128xf32> to vector<64x128xf32>
    %88 = arith.addf %83, %87 : vector<64x128xf32>
    %c0_35 = arith.constant 0 : index
    %c0_36 = arith.constant 0 : index
    %89 = vector.load %arg5[%c0_35, %c0_36] : memref<64x128xf32, #tpu.memory_space<vmem>>, vector<64x128xf32>
    tpu.vector_store %arg5[%c0_35, %c0_36], %88 {strides = array<i32>} : memref<64x128xf32, #tpu.memory_space<vmem>>, vector<64x128xf32>,
    return
  }
  func.func @transform_0(%arg0: i32) -> (i32, i32) {
    %c0_i32 = arith.constant 0 : i32
    %c0_i32_0 = arith.constant 0 : i32
    return %arg0, %c0_i32 : i32, i32
  }
  func.func @transform_1(%arg0: i32) -> (i32, i32) {
    %c0_i32 = arith.constant 0 : i32
    %c0_i32_0 = arith.constant 0 : i32
    return %arg0, %c0_i32 : i32, i32
  }
  func.func @transform_2(%arg0: i32) -> (i32, i32, i32) {
    %c0_i32 = arith.constant 0 : i32
    %c0_i32_0 = arith.constant 0 : i32
    %c0_i32_1 = arith.constant 0 : i32
    %c0_i32_2 = arith.constant 0 : i32
    return %c0_i32, %c0_i32_0, %c0_i32_1 : i32, i32, i32
  }
  func.func @transform_3(%arg0: i32) -> (i32, i32) {
    %c0_i32 = arith.constant 0 : i32
    %c0_i32_0 = arith.constant 0 : i32
    %c0_i32_1 = arith.constant 0 : i32
    return %c0_i32, %c0_i32_0 : i32, i32
  }
  func.func @transform_4(%arg0: i32) -> (i32, i32) {
    %c0_i32 = arith.constant 0 : i32
    %c0_i32_0 = arith.constant 0 : i32
    return %arg0, %c0_i32 : i32, i32
  }
}

</mosaic_0001>

<llo_original>
// kernel: tpu_custom_call.1
$region0: #{tpu_custom_call.1}
  #allocation0 [shape = 'u32[]', space=smem, size = 0x4, offset = 0x4, fixed_abs, tag = 'smem constant byte address 0x4 - core index']
  #allocation1 [shape = 'u32[144,128]{1,0:T(1,128)}', space=vmem, size = 0x12000, scoped, tag = 'internal scratch']
  %s0 = inlined_call_operand.hbm [shape: bf16[64,128], index: 0, kind: input, shape index: {}]
  %s1 = inlined_call_operand.hbm [shape: f32[64,128], index: 1, kind: input, shape index: {}]
  %s2 = inlined_call_operand.hbm [shape: bf16[8,128,128], index: 2, kind: input, shape index: {}]
  %s3 = inlined_call_operand.vmem [shape: f32[8,128], index: 3, kind: input, shape index: {}]
  %s4 = inlined_call_operand.hbm [shape: f32[64,128], index: 4, kind: output, shape index: {}]
  %s5 = sld [smem:[#allocation0]]
  $region38: #{tpu_custom_call.1} parent=0
    _
  %s7 = ssub.s32 1, %s5
  %s8 = scalar_select 0, %s7, %s5
  $region1: #{tpu_custom_call.1} parent=0
    #allocation2 [shape = 'u8[16384]{0}', space=vmem, size = 0x4000, scoped, tag = 'input window, operand 0, single buffered']
    #allocation3 [shape = 's32[1]{0}', space=sflag, size = 0x4, scoped, tag = 'scoped memory for tpu_custom_call.1']
    #allocation4 [shape = 's32[1]{0}', space=sflag, size = 0x4, scoped, tag = 'scoped memory for tpu_custom_call.1']
    #allocation5 [shape = 'u8[32768]{0}', space=vmem, size = 0x8000, scoped, tag = 'input window, operand 1, single buffered']
    #allocation6 [shape = 's32[1]{0}', space=sflag, size = 0x4, scoped, tag = 'scoped memory for tpu_custom_call.1']
    #allocation7 [shape = 'u8[262144]{0}', space=vmem, size = 0x40000, scoped, tag = 'input window, operand 2, single buffered']
    #allocation8 [shape = 'u8[32768]{0}', space=vmem, size = 0x8000, scoped, tag = 'output window, operand 0, single buffered']
    %9 = vsyncpa [#allocation3], 0
    %10 = vsyncpa [#allocation6], 0
    %11 = vsyncpa [#allocation4], 0
    // Predicated region
    $region2: #{tpu_custom_call.1} parent=1 // pred_check
      _
    $region3: #{tpu_custom_call.1} parent=1 // pred_check_branch
      %13 = sbr.rel (0) target = $region5
    $region4: #{tpu_custom_call.1} parent=1 // pred_region
      %s15 = ssub.s32 512, 512
      %16 = vsyncadd [#allocation3], %s15
      %s17 = sshll.u32 [#allocation2], 4
      %s18 = int_to_ptr.vmem [resolvable:$true] %s17
      %23 = dma.hbm_to_vmem [thread:$0]  %s0, 512, %s18, [#allocation3], 64, 64, 4
    $region5: #{tpu_custom_call.1} parent=1 // pred_fallthru
      _
    // Predicated region
    $region6: #{tpu_custom_call.1} parent=1 // pred_check
      _
    $region7: #{tpu_custom_call.1} parent=1 // pred_check_branch
      %25 = sbr.rel (0) target = $region9
    $region8: #{tpu_custom_call.1} parent=1 // pred_region
      %s27 = ssub.s32 1024, 1024
      %28 = vsyncadd [#allocation6], %s27
      %s29 = sshll.u32 [#allocation5], 4
      %s30 = int_to_ptr.vmem [resolvable:$true] %s29
      %35 = dma.hbm_to_vmem [thread:$0]  %s1, 1024, %s30, [#allocation6], 128, 128, 8
    $region9: #{tpu_custom_call.1} parent=1 // pred_fallthru
      _
    // Predicated region
    $region10: #{tpu_custom_call.1} parent=1 // pred_check
      _
    $region11: #{tpu_custom_call.1} parent=1 // pred_check_branch
      %37 = sbr.rel (0) target = $region13
    $region12: #{tpu_custom_call.1} parent=1 // pred_region
      %s39 = ssub.s32 8192, 8192
      %40 = vsyncadd [#allocation6], %s39
      %s41 = sshll.u32 [#allocation7], 4
      %s42 = int_to_ptr.vmem [resolvable:$true] %s41
      %47 = dma.hbm_to_vmem [thread:$0]  %s2, 8192, %s42, [#allocation6], 64, 64, 4
    $region13: #{tpu_custom_call.1} parent=1 // pred_fallthru
      _
    // Predicated region
    $region14: #{tpu_custom_call.1} parent=1 // pred_check
      _
    $region15: #{tpu_custom_call.1} parent=1 // pred_check_branch
      %49 = sbr.rel (0) target = $region17
    $region16: #{tpu_custom_call.1} parent=1 // pred_region
      _
    $region17: #{tpu_custom_call.1} parent=1 // pred_fallthru
      _
    // Predicated region
    $region18: #{tpu_custom_call.1} parent=1 // pred_check
      _
    $region19: #{tpu_custom_call.1} parent=1 // pred_check_branch
      %51 = sbr.rel (0) target = $region21
    $region20: #{tpu_custom_call.1} parent=1 // pred_region
      %52 = dma.done [#allocation3], 512
    $region21: #{tpu_custom_call.1} parent=1 // pred_fallthru
      _
    // Predicated region
    $region22: #{tpu_custom_call.1} parent=1 // pred_check
      _
    $region23: #{tpu_custom_call.1} parent=1 // pred_check_branch
      %54 = sbr.rel (0) target = $region25
    $region24: #{tpu_custom_call.1} parent=1 // pred_region
      %55 = dma.done [#allocation6], 1024
    $region25: #{tpu_custom_call.1} parent=1 // pred_fallthru
      _
    // Predicated region
    $region26: #{tpu_custom_call.1} parent=1 // pred_check
      _
    $region27: #{tpu_custom_call.1} parent=1 // pred_check_branch
      %57 = sbr.rel (0) target = $region29
    $region28: #{tpu_custom_call.1} parent=1 // pred_region
      %58 = dma.done [#allocation6], 8192
    $region29: #{tpu_custom_call.1} parent=1 // pred_fallthru
      _
    %v60 = vld [vmem:[%s3] sm:$0xff]
    %v61 = vld [vmem:[#allocation2] sm:$0xf]
    %v62 = vld [vmem:[#allocation2 + $0x4] sm:$0xf]
    %v63 = vld [vmem:[#allocation2 + $0x8] sm:$0xf]
    %v64 = vld [vmem:[#allocation2 + $0xc] sm:$0xf]
    %v65 = vld [vmem:[#allocation2 + $0x10] sm:$0xf]
    %v66 = vld [vmem:[#allocation2 + $0x14] sm:$0xf]
    %v67 = vld [vmem:[#allocation2 + $0x18] sm:$0xf]
    %v68 = vld [vmem:[#allocation2 + $0x1c] sm:$0xf]
    %v69 = vld [vmem:[#allocation7] sm:$0xf]
    %v70 = vld [vmem:[#allocation7 + $0x4] sm:$0xf]
    %v71 = vld [vmem:[#allocation7 + $0x8] sm:$0xf]
    %v72 = vld [vmem:[#allocation7 + $0xc] sm:$0xf]
    %v73 = vld [vmem:[#allocation7 + $0x10] sm:$0xf]
    %v74 = vld [vmem:[#allocation7 + $0x14] sm:$0xf]
    %v75 = vld [vmem:[#allocation7 + $0x18] sm:$0xf]
    %v76 = vld [vmem:[#allocation7 + $0x1c] sm:$0xf]
    %v77 = vld [vmem:[#allocation7 + $0x20] sm:$0xf]
    %v78 = vld [vmem:[#allocation7 + $0x24] sm:$0xf]
    %v79 = vld [vmem:[#allocation7 + $0x28] sm:$0xf]
    %v80 = vld [vmem:[#allocation7 + $0x2c] sm:$0xf]
    %v81 = vld [vmem:[#allocation7 + $0x30] sm:$0xf]
    %v82 = vld [vmem:[#allocation7 + $0x34] sm:$0xf]
    %v83 = vld [vmem:[#allocation7 + $0x38] sm:$0xf]
    %v84 = vld [vmem:[#allocation7 + $0x3c] sm:$0xf]
    %v85 = vlaneseq
    %v86 = vshrl.u32 %v85, 7
    %v87 = vsub.s32 0, %v86
    %v88 = vrot.slane %v60, %v87
    %v97 = vunpack.c.l.b16 %v61
    %v98 = vunpack.c.l.b16 %v62
    %v99 = vunpack.c.l.b16 %v63
    %v100 = vunpack.c.l.b16 %v64
    %v101 = vunpack.c.l.b16 %v65
    %v102 = vunpack.c.l.b16 %v66
    %v103 = vunpack.c.l.b16 %v67
    %v104 = vunpack.c.l.b16 %v68
    %v105 = vpack.c.b16 %v98, %v97
    %v106 = vpack.c.b16 %v100, %v99
    %v107 = vpack.c.b16 %v102, %v101
    %v108 = vpack.c.b16 %v104, %v103
    %v129 = vunpack.c.l.b16 %v69
    %v130 = vunpack.c.l.b16 %v70
    %v131 = vunpack.c.l.b16 %v71
    %v132 = vunpack.c.l.b16 %v72
    %v133 = vunpack.c.l.b16 %v73
    %v134 = vunpack.c.l.b16 %v74
    %v135 = vunpack.c.l.b16 %v75
    %v136 = vunpack.c.l.b16 %v76
    %v137 = vunpack.c.l.b16 %v77
    %v138 = vunpack.c.l.b16 %v78
    %v139 = vunpack.c.l.b16 %v79
    %v140 = vunpack.c.l.b16 %v80
    %v141 = vunpack.c.l.b16 %v81
    %v142 = vunpack.c.l.b16 %v82
    %v143 = vunpack.c.l.b16 %v83
    %v144 = vunpack.c.l.b16 %v84
    %v145 = vpack.c.b16 %v130, %v129
    %v146 = vpack.c.b16 %v132, %v131
    %v147 = vpack.c.b16 %v134, %v133
    %v148 = vpack.c.b16 %v136, %v135
    %v149 = vpack.c.b16 %v138, %v137
    %v150 = vpack.c.b16 %v140, %v139
    %v151 = vpack.c.b16 %v142, %v141
    %v152 = vpack.c.b16 %v144, %v143
    %161 = vmatprep.subr.bf16.mxu0 0
    %162 = vmatpush1.bf16.msra.mxu0 %v145
    %163 = vmatprep.subr.bf16.mxu0 0
    %164 = vmatpush1.bf16.msra.mxu0 %v146
    %165 = vmatprep.subr.bf16.mxu0 0
    %166 = vmatpush1.bf16.msra.mxu0 %v147
    %167 = vmatprep.subr.bf16.mxu0 0
    %168 = vmatpush1.bf16.msra.mxu0 %v148
    %169 = vmatprep.subr.bf16.mxu0 0
    %170 = vmatpush1.bf16.msra.mxu0 %v149
    %171 = vmatprep.subr.bf16.mxu0 0
    %172 = vmatpush1.bf16.msra.mxu0 %v150
    %173 = vmatprep.subr.bf16.mxu0 0
    %174 = vmatpush1.bf16.msra.mxu0 %v151
    %175 = vmatprep.subr.bf16.mxu0 0
    %176 = vmatpush1.bf16.msra.mxu0 %v152
    %177 = vmatprep.subr.bf16.mxu0 0
    %178 = vmatpush1.bf16.msra.mxu0 0
    %179 = vmatprep.subr.bf16.mxu0 0
    %180 = vmatpush1.bf16.msra.mxu0 0
    %181 = vmatprep.subr.bf16.mxu0 0
    %182 = vmatpush1.bf16.msra.mxu0 0
    %183 = vmatprep.subr.bf16.mxu0 0
    %184 = vmatpush1.bf16.msra.mxu0 0
    %185 = vmatprep.subr.bf16.mxu0 0
    %186 = vmatpush1.bf16.msra.mxu0 0
    %187 = vmatprep.subr.bf16.mxu0 0
    %188 = vmatpush1.bf16.msra.mxu0 0
    %189 = vmatprep.subr.bf16.mxu0 0
    %190 = vmatpush1.bf16.msra.mxu0 0
    %191 = vmatprep.subr.bf16.mxu0 0
    %192 = vmatpush1.bf16.msra.mxu0 0
    %193 = vmatprep.mubr.bf16.mxu0 0
    %194 = vmatmul.mubr.bf16.gmra.mrb[0].mxu0 %v105
    %v195 = vpop.f32.mrb[0].mxu0
    %v196 = vadd.f32 %v88, %v195
    %v197 = vpop.f32.mrb[0].mxu0
    %v198 = vpop.f32.mrb[0].mxu0
    %v199 = vadd.f32 %v88, %v198
    %v200 = vpop.f32.mrb[0].mxu0
    %201 = vmatprep.mubr.bf16.mxu0 0
    %202 = vmatmul.mubr.bf16.gmra.mrb[0].mxu0 %v106
    %v203 = vpop.f32.mrb[0].mxu0
    %v204 = vadd.f32 %v88, %v203
    %v205 = vpop.f32.mrb[0].mxu0
    %v206 = vpop.f32.mrb[0].mxu0
    %v207 = vadd.f32 %v88, %v206
    %v208 = vpop.f32.mrb[0].mxu0
    %209 = vmatprep.mubr.bf16.mxu0 0
    %210 = vmatmul.mubr.bf16.gmra.mrb[0].mxu0 %v107
    %v211 = vpop.f32.mrb[0].mxu0
    %v212 = vadd.f32 %v88, %v211
    %v213 = vpop.f32.mrb[0].mxu0
    %v214 = vpop.f32.mrb[0].mxu0
    %v215 = vadd.f32 %v88, %v214
    %v216 = vpop.f32.mrb[0].mxu0
    %217 = vmatprep.mubr.bf16.mxu0 0
    %218 = vmatmul.mubr.bf16.gmra.mrb[0].mxu0 %v108
    %v219 = vpop.f32.mrb[0].mxu0
    %v220 = vadd.f32 %v88, %v219
    %v221 = vpop.f32.mrb[0].mxu0
    %v222 = vpop.f32.mrb[0].mxu0
    %v223 = vadd.f32 %v88, %v222
    %v224 = vpop.f32.mrb[0].mxu0
    %225 = vdwg.mxu0
    %v226 = vmax.f32 %v196, 0.0
    %v227 = vmax.f32 %v199, 0.0
    %v228 = vmax.f32 %v204, 0.0
    %v229 = vmax.f32 %v207, 0.0
    %v230 = vmax.f32 %v212, 0.0
    %v231 = vmax.f32 %v215, 0.0
    %v232 = vmax.f32 %v220, 0.0
    %v233 = vmax.f32 %v223, 0.0
    %v234 = vpack.c.bf16 %v227, %v226
    %v235 = vpack.c.bf16 %v229, %v228
    %v236 = vpack.c.bf16 %v231, %v230
    %v237 = vpack.c.bf16 %v233, %v232
    %s238 = scalar_lea.vmem [#allocation7], 64
    %v239 = vld [vmem:[%s238] sm:$0xf]
    %v240 = vld [vmem:[%s238 + $0x4] sm:$0xf]
    %v241 = vld [vmem:[%s238 + $0x8] sm:$0xf]
    %v242 = vld [vmem:[%s238 + $0xc] sm:$0xf]
    %v243 = vld [vmem:[%s238 + $0x10] sm:$0xf]
    %v244 = vld [vmem:[%s238 + $0x14] sm:$0xf]
    %v245 = vld [vmem:[%s238 + $0x18] sm:$0xf]
    %v246 = vld [vmem:[%s238 + $0x1c] sm:$0xf]
    %v247 = vld [vmem:[%s238 + $0x20] sm:$0xf]
    %v248 = vld [vmem:[%s238 + $0x24] sm:$0xf]
    %v249 = vld [vmem:[%s238 + $0x28] sm:$0xf]
    %v250 = vld [vmem:[%s238 + $0x2c] sm:$0xf]
    %v251 = vld [vmem:[%s238 + $0x30] sm:$0xf]
    %v252 = vld [vmem:[%s238 + $0x34] sm:$0xf]
    %v253 = vld [vmem:[%s238 + $0x38] sm:$0xf]
    %v254 = vld [vmem:[%s238 + $0x3c] sm:$0xf]
    %v255 = vlaneseq
    %v256 = vshrl.u32 %v255, 7
    %v257 = vsub.s32 1, %v256
    %v258 = vrot.slane %v60, %v257
    %v275 = vunpack.c.l.b16 %v239
    %v276 = vunpack.c.l.b16 %v240
    %v277 = vunpack.c.l.b16 %v241
    %v278 = vunpack.c.l.b16 %v242
    %v279 = vunpack.c.l.b16 %v243
    %v280 = vunpack.c.l.b16 %v244
    %v281 = vunpack.c.l.b16 %v245
    %v282 = vunpack.c.l.b16 %v246
    %v283 = vunpack.c.l.b16 %v247
    %v284 = vunpack.c.l.b16 %v248
    %v285 = vunpack.c.l.b16 %v249
    %v286 = vunpack.c.l.b16 %v250
    %v287 = vunpack.c.l.b16 %v251
    %v288 = vunpack.c.l.b16 %v252
    %v289 = vunpack.c.l.b16 %v253
    %v290 = vunpack.c.l.b16 %v254
    %v291 = vpack.c.b16 %v276, %v275
    %v292 = vpack.c.b16 %v278, %v277
    %v293 = vpack.c.b16 %v280, %v279
    %v294 = vpack.c.b16 %v282, %v281
    %v295 = vpack.c.b16 %v284, %v283
    %v296 = vpack.c.b16 %v286, %v285
    %v297 = vpack.c.b16 %v288, %v287
    %v298 = vpack.c.b16 %v290, %v289
    %307 = vmatprep.subr.bf16.mxu0 0
    %308 = vmatpush1.bf16.msra.mxu0 %v291
    %309 = vmatprep.subr.bf16.mxu0 0
    %310 = vmatpush1.bf16.msra.mxu0 %v292
    %311 = vmatprep.subr.bf16.mxu0 0
    %312 = vmatpush1.bf16.msra.mxu0 %v293
    %313 = vmatprep.subr.bf16.mxu0 0
    %314 = vmatpush1.bf16.msra.mxu0 %v294
    %315 = vmatprep.subr.bf16.mxu0 0
    %316 = vmatpush1.bf16.msra.mxu0 %v295
    %317 = vmatprep.subr.bf16.mxu0 0
    %318 = vmatpush1.bf16.msra.mxu0 %v296
    %319 = vmatprep.subr.bf16.mxu0 0
    %320 = vmatpush1.bf16.msra.mxu0 %v297
    %321 = vmatprep.subr.bf16.mxu0 0
    %322 = vmatpush1.bf16.msra.mxu0 %v298
    %323 = vmatprep.subr.bf16.mxu0 0
    %324 = vmatpush1.bf16.msra.mxu0 0
    %325 = vmatprep.subr.bf16.mxu0 0
    %326 = vmatpush1.bf16.msra.mxu0 0
    %327 = vmatprep.subr.bf16.mxu0 0
    %328 = vmatpush1.bf16.msra.mxu0 0
    %329 = vmatprep.subr.bf16.mxu0 0
    %330 = vmatpush1.bf16.msra.mxu0 0
    %331 = vmatprep.subr.bf16.mxu0 0
    %332 = vmatpush1.bf16.msra.mxu0 0
    %333 = vmatprep.subr.bf16.mxu0 0
    %334 = vmatpush1.bf16.msra.mxu0 0
    %335 = vmatprep.subr.bf16.mxu0 0
    %336 = vmatpush1.bf16.msra.mxu0 0
    %337 = vmatprep.subr.bf16.mxu0 0
    %338 = vmatpush1.bf16.msra.mxu0 0
    %339 = vmatprep.mubr.bf16.mxu0 0
    %340 = vmatmul.mubr.bf16.gmra.mrb[0].mxu0 %v234
    %v341 = vpop.f32.mrb[0].mxu0
    %v342 = vadd.f32 %v258, %v341
    %v343 = vpop.f32.mrb[0].mxu0
    %v344 = vpop.f32.mrb[0].mxu0
    %v345 = vadd.f32 %v258, %v344
    %v346 = vpop.f32.mrb[0].mxu0
    %347 = vmatprep.mubr.bf16.mxu0 0
    %348 = vmatmul.mubr.bf16.gmra.mrb[0].mxu0 %v235
    %v349 = vpop.f32.mrb[0].mxu0
    %v350 = vadd.f32 %v258, %v349
    %v351 = vpop.f32.mrb[0].mxu0
    %v352 = vpop.f32.mrb[0].mxu0
    %v353 = vadd.f32 %v258, %v352
    %v354 = vpop.f32.mrb[0].mxu0
    %355 = vmatprep.mubr.bf16.mxu0 0
    %356 = vmatmul.mubr.bf16.gmra.mrb[0].mxu0 %v236
    %v357 = vpop.f32.mrb[0].mxu0
    %v358 = vadd.f32 %v258, %v357
    %v359 = vpop.f32.mrb[0].mxu0
    %v360 = vpop.f32.mrb[0].mxu0
    %v361 = vadd.f32 %v258, %v360
    %v362 = vpop.f32.mrb[0].mxu0
    %363 = vmatprep.mubr.bf16.mxu0 0
    %364 = vmatmul.mubr.bf16.gmra.mrb[0].mxu0 %v237
    %v365 = vpop.f32.mrb[0].mxu0
    %v366 = vadd.f32 %v258, %v365
    %v367 = vpop.f32.mrb[0].mxu0
    %v368 = vpop.f32.mrb[0].mxu0
    %v369 = vadd.f32 %v258, %v368
    %v370 = vpop.f32.mrb[0].mxu0
    %371 = vdwg.mxu0
    %v372 = vmax.f32 %v342, 0.0
    %v373 = vmax.f32 %v345, 0.0
    %v374 = vmax.f32 %v350, 0.0
    %v375 = vmax.f32 %v353, 0.0
    %v376 = vmax.f32 %v358, 0.0
    %v377 = vmax.f32 %v361, 0.0
    %v378 = vmax.f32 %v366, 0.0
    %v379 = vmax.f32 %v369, 0.0
    %v380 = vpack.c.bf16 %v373, %v372
    %v381 = vpack.c.bf16 %v375, %v374
    %v382 = vpack.c.bf16 %v377, %v376
    %v383 = vpack.c.bf16 %v379, %v378
    %s384 = scalar_lea.vmem [#allocation7], 128
    %v385 = vld [vmem:[%s384] sm:$0xf]
    %v386 = vld [vmem:[%s384 + $0x4] sm:$0xf]
    %v387 = vld [vmem:[%s384 + $0x8] sm:$0xf]
    %v388 = vld [vmem:[%s384 + $0xc] sm:$0xf]
    %v389 = vld [vmem:[%s384 + $0x10] sm:$0xf]
    %v390 = vld [vmem:[%s384 + $0x14] sm:$0xf]
    %v391 = vld [vmem:[%s384 + $0x18] sm:$0xf]
    %v392 = vld [vmem:[%s384 + $0x1c] sm:$0xf]
    %v393 = vld [vmem:[%s384 + $0x20] sm:$0xf]
    %v394 = vld [vmem:[%s384 + $0x24] sm:$0xf]
    %v395 = vld [vmem:[%s384 + $0x28] sm:$0xf]
    %v396 = vld [vmem:[%s384 + $0x2c] sm:$0xf]
    %v397 = vld [vmem:[%s384 + $0x30] sm:$0xf]
    %v398 = vld [vmem:[%s384 + $0x34] sm:$0xf]
    %v399 = vld [vmem:[%s384 + $0x38] sm:$0xf]
    %v400 = vld [vmem:[%s384 + $0x3c] sm:$0xf]
    %v401 = vlaneseq
    %v402 = vshrl.u32 %v401, 7
    %v403 = vsub.s32 2, %v402
    %v404 = vrot.slane %v60, %v403
    %v421 = vunpack.c.l.b16 %v385
    %v422 = vunpack.c.l.b16 %v386
    %v423 = vunpack.c.l.b16 %v387
    %v424 = vunpack.c.l.b16 %v388
    %v425 = vunpack.c.l.b16 %v389
    %v426 = vunpack.c.l.b16 %v390
    %v427 = vunpack.c.l.b16 %v391
    %v428 = vunpack.c.l.b16 %v392
    %v429 = vunpack.c.l.b16 %v393
    %v430 = vunpack.c.l.b16 %v394
    %v431 = vunpack.c.l.b16 %v395
    %v432 = vunpack.c.l.b16 %v396
    %v433 = vunpack.c.l.b16 %v397
    %v434 = vunpack.c.l.b16 %v398
    %v435 = vunpack.c.l.b16 %v399
    %v436 = vunpack.c.l.b16 %v400
    %v437 = vpack.c.b16 %v422, %v421
    %v438 = vpack.c.b16 %v424, %v423
    %v439 = vpack.c.b16 %v426, %v425
    %v440 = vpack.c.b16 %v428, %v427
    %v441 = vpack.c.b16 %v430, %v429
    %v442 = vpack.c.b16 %v432, %v431
    %v443 = vpack.c.b16 %v434, %v433
    %v444 = vpack.c.b16 %v436, %v435
    %453 = vmatprep.subr.bf16.mxu0 0
    %454 = vmatpush1.bf16.msra.mxu0 %v437
    %455 = vmatprep.subr.bf16.mxu0 0
    %456 = vmatpush1.bf16.msra.mxu0 %v438
    %457 = vmatprep.subr.bf16.mxu0 0
    %458 = vmatpush1.bf16.msra.mxu0 %v439
    %459 = vmatprep.subr.bf16.mxu0 0
    %460 = vmatpush1.bf16.msra.mxu0 %v440
    %461 = vmatprep.subr.bf16.mxu0 0
    %462 = vmatpush1.bf16.msra.mxu0 %v441
    %463 = vmatprep.subr.bf16.mxu0 0
    %464 = vmatpush1.bf16.msra.mxu0 %v442
    %465 = vmatprep.subr.bf16.mxu0 0
    %466 = vmatpush1.bf16.msra.mxu0 %v443
    %467 = vmatprep.subr.bf16.mxu0 0
    %468 = vmatpush1.bf16.msra.mxu0 %v444
    %469 = vmatprep.subr.bf16.mxu0 0
    %470 = vmatpush1.bf16.msra.mxu0 0
    %471 = vmatprep.subr.bf16.mxu0 0
    %472 = vmatpush1.bf16.msra.mxu0 0
    %473 = vmatprep.subr.bf16.mxu0 0
    %474 = vmatpush1.bf16.msra.mxu0 0
    %475 = vmatprep.subr.bf16.mxu0 0
    %476 = vmatpush1.bf16.msra.mxu0 0
    %477 = vmatprep.subr.bf16.mxu0 0
    %478 = vmatpush1.bf16.msra.mxu0 0
    %479 = vmatprep.subr.bf16.mxu0 0
    %480 = vmatpush1.bf16.msra.mxu0 0
    %481 = vmatprep.subr.bf16.mxu0 0
    %482 = vmatpush1.bf16.msra.mxu0 0
    %483 = vmatprep.subr.bf16.mxu0 0
    %484 = vmatpush1.bf16.msra.mxu0 0
    %485 = vmatprep.mubr.bf16.mxu0 0
    %486 = vmatmul.mubr.bf16.gmra.mrb[0].mxu0 %v380
    %v487 = vpop.f32.mrb[0].mxu0
    %v488 = vadd.f32 %v404, %v487
    %v489 = vpop.f32.mrb[0].mxu0
    %v490 = vpop.f32.mrb[0].mxu0
    %v491 = vadd.f32 %v404, %v490
    %v492 = vpop.f32.mrb[0].mxu0
    %493 = vmatprep.mubr.bf16.mxu0 0
    %494 = vmatmul.mubr.bf16.gmra.mrb[0].mxu0 %v381
    %v495 = vpop.f32.mrb[0].mxu0
    %v496 = vadd.f32 %v404, %v495
    %v497 = vpop.f32.mrb[0].mxu0
    %v498 = vpop.f32.mrb[0].mxu0
    %v499 = vadd.f32 %v404, %v498
    %v500 = vpop.f32.mrb[0].mxu0
    %501 = vmatprep.mubr.bf16.mxu0 0
    %502 = vmatmul.mubr.bf16.gmra.mrb[0].mxu0 %v382
    %v503 = vpop.f32.mrb[0].mxu0
    %v504 = vadd.f32 %v404, %v503
    %v505 = vpop.f32.mrb[0].mxu0
    %v506 = vpop.f32.mrb[0].mxu0
    %v507 = vadd.f32 %v404, %v506
    %v508 = vpop.f32.mrb[0].mxu0
    %509 = vmatprep.mubr.bf16.mxu0 0
    %510 = vmatmul.mubr.bf16.gmra.mrb[0].mxu0 %v383
    %v511 = vpop.f32.mrb[0].mxu0
    %v512 = vadd.f32 %v404, %v511
    %v513 = vpop.f32.mrb[0].mxu0
    %v514 = vpop.f32.mrb[0].mxu0
    %v515 = vadd.f32 %v404, %v514
    %v516 = vpop.f32.mrb[0].mxu0
    %517 = vdwg.mxu0
    %v518 = vmax.f32 %v488, 0.0
    %v519 = vmax.f32 %v491, 0.0
    %v520 = vmax.f32 %v496, 0.0
    %v521 = vmax.f32 %v499, 0.0
    %v522 = vmax.f32 %v504, 0.0
    %v523 = vmax.f32 %v507, 0.0
    %v524 = vmax.f32 %v512, 0.0
    %v525 = vmax.f32 %v515, 0.0
    %v526 = vpack.c.bf16 %v519, %v518
    %v527 = vpack.c.bf16 %v521, %v520
    %v528 = vpack.c.bf16 %v523, %v522
    %v529 = vpack.c.bf16 %v525, %v524
    %s530 = scalar_lea.vmem [#allocation7], 192
    %v531 = vld [vmem:[%s530] sm:$0xf]
    %v532 = vld [vmem:[%s530 + $0x4] sm:$0xf]
    %v533 = vld [vmem:[%s530 + $0x8] sm:$0xf]
    %v534 = vld [vmem:[%s530 + $0xc] sm:$0xf]
    %v535 = vld [vmem:[%s530 + $0x10] sm:$0xf]
    %v536 = vld [vmem:[%s530 + $0x14] sm:$0xf]
    %v537 = vld [vmem:[%s530 + $0x18] sm:$0xf]
    %v538 = vld [vmem:[%s530 + $0x1c] sm:$0xf]
    %v539 = vld [vmem:[%s530 + $0x20] sm:$0xf]
    %v540 = vld [vmem:[%s530 + $0x24] sm:$0xf]
    %v541 = vld [vmem:[%s530 + $0x28] sm:$0xf]
    %v542 = vld [vmem:[%s530 + $0x2c] sm:$0xf]
    %v543 = vld [vmem:[%s530 + $0x30] sm:$0xf]
    %v544 = vld [vmem:[%s530 + $0x34] sm:$0xf]
    %v545 = vld [vmem:[%s530 + $0x38] sm:$0xf]
    %v546 = vld [vmem:[%s530 + $0x3c] sm:$0xf]
    %v547 = vlaneseq
    %v548 = vshrl.u32 %v547, 7
    %v549 = vsub.s32 3, %v548
    %v550 = vrot.slane %v60, %v549
    %v567 = vunpack.c.l.b16 %v531
    %v568 = vunpack.c.l.b16 %v532
    %v569 = vunpack.c.l.b16 %v533
    %v570 = vunpack.c.l.b16 %v534
    %v571 = vunpack.c.l.b16 %v535
    %v572 = vunpack.c.l.b16 %v536
    %v573 = vunpack.c.l.b16 %v537
    %v574 = vunpack.c.l.b16 %v538
    %v575 = vunpack.c.l.b16 %v539
    %v576 = vunpack.c.l.b16 %v540
    %v577 = vunpack.c.l.b16 %v541
    %v578 = vunpack.c.l.b16 %v542
    %v579 = vunpack.c.l.b16 %v543
    %v580 = vunpack.c.l.b16 %v544
    %v581 = vunpack.c.l.b16 %v545
    %v582 = vunpack.c.l.b16 %v546
    %v583 = vpack.c.b16 %v568, %v567
    %v584 = vpack.c.b16 %v570, %v569
    %v585 = vpack.c.b16 %v572, %v571
    %v586 = vpack.c.b16 %v574, %v573
    %v587 = vpack.c.b16 %v576, %v575
    %v588 = vpack.c.b16 %v578, %v577
    %v589 = vpack.c.b16 %v580, %v579
    %v590 = vpack.c.b16 %v582, %v581
    %599 = vmatprep.subr.bf16.mxu0 0
    %600 = vmatpush1.bf16.msra.mxu0 %v583
    %601 = vmatprep.subr.bf16.mxu0 0
    %602 = vmatpush1.bf16.msra.mxu0 %v584
    %603 = vmatprep.subr.bf16.mxu0 0
    %604 = vmatpush1.bf16.msra.mxu0 %v585
    %605 = vmatprep.subr.bf16.mxu0 0
    %606 = vmatpush1.bf16.msra.mxu0 %v586
    %607 = vmatprep.subr.bf16.mxu0 0
    %608 = vmatpush1.bf16.msra.mxu0 %v587
    %609 = vmatprep.subr.bf16.mxu0 0
    %610 = vmatpush1.bf16.msra.mxu0 %v588
    %611 = vmatprep.subr.bf16.mxu0 0
    %612 = vmatpush1.bf16.msra.mxu0 %v589
    %613 = vmatprep.subr.bf16.mxu0 0
    %614 = vmatpush1.bf16.msra.mxu0 %v590
    %615 = vmatprep.subr.bf16.mxu0 0
    %616 = vmatpush1.bf16.msra.mxu0 0
    %617 = vmatprep.subr.bf16.mxu0 0
    %618 = vmatpush1.bf16.msra.mxu0 0
    %619 = vmatprep.subr.bf16.mxu0 0
    %620 = vmatpush1.bf16.msra.mxu0 0
    %621 = vmatprep.subr.bf16.mxu0 0
    %622 = vmatpush1.bf16.msra.mxu0 0
    %623 = vmatprep.subr.bf16.mxu0 0
    %624 = vmatpush1.bf16.msra.mxu0 0
    %625 = vmatprep.subr.bf16.mxu0 0
    %626 = vmatpush1.bf16.msra.mxu0 0
    %627 = vmatprep.subr.bf16.mxu0 0
    %628 = vmatpush1.bf16.msra.mxu0 0
    %629 = vmatprep.subr.bf16.mxu0 0
    %630 = vmatpush1.bf16.msra.mxu0 0
    %631 = vmatprep.mubr.bf16.mxu0 0
    %632 = vmatmul.mubr.bf16.gmra.mrb[0].mxu0 %v526
    %v633 = vpop.f32.mrb[0].mxu0
    %v634 = vadd.f32 %v550, %v633
    %v635 = vpop.f32.mrb[0].mxu0
    %v636 = vpop.f32.mrb[0].mxu0
    %v637 = vadd.f32 %v550, %v636
    %v638 = vpop.f32.mrb[0].mxu0
    %639 = vmatprep.mubr.bf16.mxu0 0
    %640 = vmatmul.mubr.bf16.gmra.mrb[0].mxu0 %v527
    %v641 = vpop.f32.mrb[0].mxu0
    %v642 = vadd.f32 %v550, %v641
    %v643 = vpop.f32.mrb[0].mxu0
    %v644 = vpop.f32.mrb[0].mxu0
    %v645 = vadd.f32 %v550, %v644
    %v646 = vpop.f32.mrb[0].mxu0
    %647 = vmatprep.mubr.bf16.mxu0 0
    %648 = vmatmul.mubr.bf16.gmra.mrb[0].mxu0 %v528
    %v649 = vpop.f32.mrb[0].mxu0
    %v650 = vadd.f32 %v550, %v649
    %v651 = vpop.f32.mrb[0].mxu0
    %v652 = vpop.f32.mrb[0].mxu0
    %v653 = vadd.f32 %v550, %v652
    %v654 = vpop.f32.mrb[0].mxu0
    %655 = vmatprep.mubr.bf16.mxu0 0
    %656 = vmatmul.mubr.bf16.gmra.mrb[0].mxu0 %v529
    %v657 = vpop.f32.mrb[0].mxu0
    %v658 = vadd.f32 %v550, %v657
    %v659 = vpop.f32.mrb[0].mxu0
    %v660 = vpop.f32.mrb[0].mxu0
    %v661 = vadd.f32 %v550, %v660
    %v662 = vpop.f32.mrb[0].mxu0
    %663 = vdwg.mxu0
    %v664 = vmul.f32 %v634, 1.442695
    %v665 = vpow.pop %v664
    %v666 = vmul.f32 %v637, 1.442695
    %v667 = vpow.pop %v666
    %v668 = vmul.f32 %v642, 1.442695
    %v669 = vpow.pop %v668
    %v670 = vmul.f32 %v645, 1.442695
    %v671 = vpow.pop %v670
    %v672 = vmul.f32 %v650, 1.442695
    %v673 = vpow.pop %v672
    %v674 = vmul.f32 %v653, 1.442695
    %v675 = vpow.pop %v674
    %v676 = vmul.f32 %v658, 1.442695
    %v677 = vpow.pop %v676
    %v678 = vmul.f32 %v661, 1.442695
    %v679 = vpow.pop %v678
    %v680 = vld [vmem:[#allocation5] sm:$0xff]
    %v681 = vld [vmem:[#allocation5 + $0x8] sm:$0xff]
    %v682 = vld [vmem:[#allocation5 + $0x10] sm:$0xff]
    %v683 = vld [vmem:[#allocation5 + $0x18] sm:$0xff]
    %v684 = vld [vmem:[#allocation5 + $0x20] sm:$0xff]
    %v685 = vld [vmem:[#allocation5 + $0x28] sm:$0xff]
    %v686 = vld [vmem:[#allocation5 + $0x30] sm:$0xff]
    %v687 = vld [vmem:[#allocation5 + $0x38] sm:$0xff]
    %v688 = vmul.f32 %v665, %v680
    %v689 = vmul.f32 %v667, %v681
    %v690 = vmul.f32 %v669, %v682
    %v691 = vmul.f32 %v671, %v683
    %v692 = vmul.f32 %v673, %v684
    %v693 = vmul.f32 %v675, %v685
    %v694 = vmul.f32 %v677, %v686
    %v695 = vmul.f32 %v679, %v687
    %v696 = vadd.f32 %v634, %v688
    %v697 = vadd.f32 %v637, %v689
    %v698 = vadd.f32 %v642, %v690
    %v699 = vadd.f32 %v645, %v691
    %v700 = vadd.f32 %v650, %v692
    %v701 = vadd.f32 %v653, %v693
    %v702 = vadd.f32 %v658, %v694
    %v703 = vadd.f32 %v661, %v695
    %v704 = vpack.c.bf16 %v697, %v696
    %v705 = vpack.c.bf16 %v699, %v698
    %v706 = vpack.c.bf16 %v701, %v700
    %v707 = vpack.c.bf16 %v703, %v702
    %s708 = scalar_lea.vmem [#allocation7], 256
    %v709 = vld [vmem:[%s708] sm:$0xf]
    %v710 = vld [vmem:[%s708 + $0x4] sm:$0xf]
    %v711 = vld [vmem:[%s708 + $0x8] sm:$0xf]
    %v712 = vld [vmem:[%s708 + $0xc] sm:$0xf]
    %v713 = vld [vmem:[%s708 + $0x10] sm:$0xf]
    %v714 = vld [vmem:[%s708 + $0x14] sm:$0xf]
    %v715 = vld [vmem:[%s708 + $0x18] sm:$0xf]
    %v716 = vld [vmem:[%s708 + $0x1c] sm:$0xf]
    %v717 = vld [vmem:[%s708 + $0x20] sm:$0xf]
    %v718 = vld [vmem:[%s708 + $0x24] sm:$0xf]
    %v719 = vld [vmem:[%s708 + $0x28] sm:$0xf]
    %v720 = vld [vmem:[%s708 + $0x2c] sm:$0xf]
    %v721 = vld [vmem:[%s708 + $0x30] sm:$0xf]
    %v722 = vld [vmem:[%s708 + $0x34] sm:$0xf]
    %v723 = vld [vmem:[%s708 + $0x38] sm:$0xf]
    %v724 = vld [vmem:[%s708 + $0x3c] sm:$0xf]
    %v725 = vlaneseq
    %v726 = vshrl.u32 %v725, 7
    %v727 = vsub.s32 4, %v726
    %v728 = vrot.slane %v60, %v727
    %v745 = vunpack.c.l.b16 %v709
    %v746 = vunpack.c.l.b16 %v710
    %v747 = vunpack.c.l.b16 %v711
    %v748 = vunpack.c.l.b16 %v712
    %v749 = vunpack.c.l.b16 %v713
    %v750 = vunpack.c.l.b16 %v714
    %v751 = vunpack.c.l.b16 %v715
    %v752 = vunpack.c.l.b16 %v716
    %v753 = vunpack.c.l.b16 %v717
    %v754 = vunpack.c.l.b16 %v718
    %v755 = vunpack.c.l.b16 %v719
    %v756 = vunpack.c.l.b16 %v720
    %v757 = vunpack.c.l.b16 %v721
    %v758 = vunpack.c.l.b16 %v722
    %v759 = vunpack.c.l.b16 %v723
    %v760 = vunpack.c.l.b16 %v724
    %v761 = vpack.c.b16 %v746, %v745
    %v762 = vpack.c.b16 %v748, %v747
    %v763 = vpack.c.b16 %v750, %v749
    %v764 = vpack.c.b16 %v752, %v751
    %v765 = vpack.c.b16 %v754, %v753
    %v766 = vpack.c.b16 %v756, %v755
    %v767 = vpack.c.b16 %v758, %v757
    %v768 = vpack.c.b16 %v760, %v759
    %777 = vmatprep.subr.bf16.mxu0 0
    %778 = vmatpush1.bf16.msra.mxu0 %v761
    %779 = vmatprep.subr.bf16.mxu0 0
    %780 = vmatpush1.bf16.msra.mxu0 %v762
    %781 = vmatprep.subr.bf16.mxu0 0
    %782 = vmatpush1.bf16.msra.mxu0 %v763
    %783 = vmatprep.subr.bf16.mxu0 0
    %784 = vmatpush1.bf16.msra.mxu0 %v764
    %785 = vmatprep.subr.bf16.mxu0 0
    %786 = vmatpush1.bf16.msra.mxu0 %v765
    %787 = vmatprep.subr.bf16.mxu0 0
    %788 = vmatpush1.bf16.msra.mxu0 %v766
    %789 = vmatprep.subr.bf16.mxu0 0
    %790 = vmatpush1.bf16.msra.mxu0 %v767
    %791 = vmatprep.subr.bf16.mxu0 0
    %792 = vmatpush1.bf16.msra.mxu0 %v768
    %793 = vmatprep.subr.bf16.mxu0 0
    %794 = vmatpush1.bf16.msra.mxu0 0
    %795 = vmatprep.subr.bf16.mxu0 0
    %796 = vmatpush1.bf16.msra.mxu0 0
    %797 = vmatprep.subr.bf16.mxu0 0
    %798 = vmatpush1.bf16.msra.mxu0 0
    %799 = vmatprep.subr.bf16.mxu0 0
    %800 = vmatpush1.bf16.msra.mxu0 0
    %801 = vmatprep.subr.bf16.mxu0 0
    %802 = vmatpush1.bf16.msra.mxu0 0
    %803 = vmatprep.subr.bf16.mxu0 0
    %804 = vmatpush1.bf16.msra.mxu0 0
    %805 = vmatprep.subr.bf16.mxu0 0
    %806 = vmatpush1.bf16.msra.mxu0 0
    %807 = vmatprep.subr.bf16.mxu0 0
    %808 = vmatpush1.bf16.msra.mxu0 0
    %809 = vmatprep.mubr.bf16.mxu0 0
    %810 = vmatmul.mubr.bf16.gmra.mrb[0].mxu0 %v704
    %v811 = vpop.f32.mrb[0].mxu0
    %v812 = vadd.f32 %v728, %v811
    %v813 = vpop.f32.mrb[0].mxu0
    %v814 = vpop.f32.mrb[0].mxu0
    %v815 = vadd.f32 %v728, %v814
    %v816 = vpop.f32.mrb[0].mxu0
    %817 = vmatprep.mubr.bf16.mxu0 0
    %818 = vmatmul.mubr.bf16.gmra.mrb[0].mxu0 %v705
    %v819 = vpop.f32.mrb[0].mxu0
    %v820 = vadd.f32 %v728, %v819
    %v821 = vpop.f32.mrb[0].mxu0
    %v822 = vpop.f32.mrb[0].mxu0
    %v823 = vadd.f32 %v728, %v822
    %v824 = vpop.f32.mrb[0].mxu0
    %825 = vmatprep.mubr.bf16.mxu0 0
    %826 = vmatmul.mubr.bf16.gmra.mrb[0].mxu0 %v706
    %v827 = vpop.f32.mrb[0].mxu0
    %v828 = vadd.f32 %v728, %v827
    %v829 = vpop.f32.mrb[0].mxu0
    %v830 = vpop.f32.mrb[0].mxu0
    %v831 = vadd.f32 %v728, %v830
    %v832 = vpop.f32.mrb[0].mxu0
    %833 = vmatprep.mubr.bf16.mxu0 0
    %834 = vmatmul.mubr.bf16.gmra.mrb[0].mxu0 %v707
    %v835 = vpop.f32.mrb[0].mxu0
    %v836 = vadd.f32 %v728, %v835
    %v837 = vpop.f32.mrb[0].mxu0
    %v838 = vpop.f32.mrb[0].mxu0
    %v839 = vadd.f32 %v728, %v838
    %v840 = vpop.f32.mrb[0].mxu0
    %841 = vdwg.mxu0
    %v842 = vmax.f32 %v812, 0.0
    %v843 = vmax.f32 %v815, 0.0
    %v844 = vmax.f32 %v820, 0.0
    %v845 = vmax.f32 %v823, 0.0
    %v846 = vmax.f32 %v828, 0.0
    %v847 = vmax.f32 %v831, 0.0
    %v848 = vmax.f32 %v836, 0.0
    %v849 = vmax.f32 %v839, 0.0
    %v850 = vpack.c.bf16 %v843, %v842
    %v851 = vpack.c.bf16 %v845, %v844
    %v852 = vpack.c.bf16 %v847, %v846
    %v853 = vpack.c.bf16 %v849, %v848
    %s854 = scalar_lea.vmem [#allocation7], 320
    %v855 = vld [vmem:[%s854] sm:$0xf]
    %v856 = vld [vmem:[%s854 + $0x4] sm:$0xf]
    %v857 = vld [vmem:[%s854 + $0x8] sm:$0xf]
    %v858 = vld [vmem:[%s854 + $0xc] sm:$0xf]
    %v859 = vld [vmem:[%s854 + $0x10] sm:$0xf]
    %v860 = vld [vmem:[%s854 + $0x14] sm:$0xf]
    %v861 = vld [vmem:[%s854 + $0x18] sm:$0xf]
    %v862 = vld [vmem:[%s854 + $0x1c] sm:$0xf]
    %v863 = vld [vmem:[%s854 + $0x20] sm:$0xf]
    %v864 = vld [vmem:[%s854 + $0x24] sm:$0xf]
    %v865 = vld [vmem:[%s854 + $0x28] sm:$0xf]
    %v866 = vld [vmem:[%s854 + $0x2c] sm:$0xf]
    %v867 = vld [vmem:[%s854 + $0x30] sm:$0xf]
    %v868 = vld [vmem:[%s854 + $0x34] sm:$0xf]
    %v869 = vld [vmem:[%s854 + $0x38] sm:$0xf]
    %v870 = vld [vmem:[%s854 + $0x3c] sm:$0xf]
    %v871 = vlaneseq
    %v872 = vshrl.u32 %v871, 7
    %v873 = vsub.s32 5, %v872
    %v874 = vrot.slane %v60, %v873
    %v891 = vunpack.c.l.b16 %v855
    %v892 = vunpack.c.l.b16 %v856
    %v893 = vunpack.c.l.b16 %v857
    %v894 = vunpack.c.l.b16 %v858
    %v895 = vunpack.c.l.b16 %v859
    %v896 = vunpack.c.l.b16 %v860
    %v897 = vunpack.c.l.b16 %v861
    %v898 = vunpack.c.l.b16 %v862
    %v899 = vunpack.c.l.b16 %v863
    %v900 = vunpack.c.l.b16 %v864
    %v901 = vunpack.c.l.b16 %v865
    %v902 = vunpack.c.l.b16 %v866
    %v903 = vunpack.c.l.b16 %v867
    %v904 = vunpack.c.l.b16 %v868
    %v905 = vunpack.c.l.b16 %v869
    %v906 = vunpack.c.l.b16 %v870
    %v907 = vpack.c.b16 %v892, %v891
    %v908 = vpack.c.b16 %v894, %v893
    %v909 = vpack.c.b16 %v896, %v895
    %v910 = vpack.c.b16 %v898, %v897
    %v911 = vpack.c.b16 %v900, %v899
    %v912 = vpack.c.b16 %v902, %v901
    %v913 = vpack.c.b16 %v904, %v903
    %v914 = vpack.c.b16 %v906, %v905
    %923 = vmatprep.subr.bf16.mxu0 0
    %924 = vmatpush1.bf16.msra.mxu0 %v907
    %925 = vmatprep.subr.bf16.mxu0 0
    %926 = vmatpush1.bf16.msra.mxu0 %v908
    %927 = vmatprep.subr.bf16.mxu0 0
    %928 = vmatpush1.bf16.msra.mxu0 %v909
    %929 = vmatprep.subr.bf16.mxu0 0
    %930 = vmatpush1.bf16.msra.mxu0 %v910
    %931 = vmatprep.subr.bf16.mxu0 0
    %932 = vmatpush1.bf16.msra.mxu0 %v911
    %933 = vmatprep.subr.bf16.mxu0 0
    %934 = vmatpush1.bf16.msra.mxu0 %v912
    %935 = vmatprep.subr.bf16.mxu0 0
    %936 = vmatpush1.bf16.msra.mxu0 %v913
    %937 = vmatprep.subr.bf16.mxu0 0
    %938 = vmatpush1.bf16.msra.mxu0 %v914
    %939 = vmatprep.subr.bf16.mxu0 0
    %940 = vmatpush1.bf16.msra.mxu0 0
    %941 = vmatprep.subr.bf16.mxu0 0
    %942 = vmatpush1.bf16.msra.mxu0 0
    %943 = vmatprep.subr.bf16.mxu0 0
    %944 = vmatpush1.bf16.msra.mxu0 0
    %945 = vmatprep.subr.bf16.mxu0 0
    %946 = vmatpush1.bf16.msra.mxu0 0
    %947 = vmatprep.subr.bf16.mxu0 0
    %948 = vmatpush1.bf16.msra.mxu0 0
    %949 = vmatprep.subr.bf16.mxu0 0
    %950 = vmatpush1.bf16.msra.mxu0 0
    %951 = vmatprep.subr.bf16.mxu0 0
    %952 = vmatpush1.bf16.msra.mxu0 0
    %953 = vmatprep.subr.bf16.mxu0 0
    %954 = vmatpush1.bf16.msra.mxu0 0
    %955 = vmatprep.mubr.bf16.mxu0 0
    %956 = vmatmul.mubr.bf16.gmra.mrb[0].mxu0 %v850
    %v957 = vpop.f32.mrb[0].mxu0
    %v958 = vadd.f32 %v874, %v957
    %v959 = vpop.f32.mrb[0].mxu0
    %v960 = vpop.f32.mrb[0].mxu0
    %v961 = vadd.f32 %v874, %v960
    %v962 = vpop.f32.mrb[0].mxu0
    %963 = vmatprep.mubr.bf16.mxu0 0
    %964 = vmatmul.mubr.bf16.gmra.mrb[0].mxu0 %v851
    %v965 = vpop.f32.mrb[0].mxu0
    %v966 = vadd.f32 %v874, %v965
    %v967 = vpop.f32.mrb[0].mxu0
    %v968 = vpop.f32.mrb[0].mxu0
    %v969 = vadd.f32 %v874, %v968
    %v970 = vpop.f32.mrb[0].mxu0
    %971 = vmatprep.mubr.bf16.mxu0 0
    %972 = vmatmul.mubr.bf16.gmra.mrb[0].mxu0 %v852
    %v973 = vpop.f32.mrb[0].mxu0
    %v974 = vadd.f32 %v874, %v973
    %v975 = vpop.f32.mrb[0].mxu0
    %v976 = vpop.f32.mrb[0].mxu0
    %v977 = vadd.f32 %v874, %v976
    %v978 = vpop.f32.mrb[0].mxu0
    %979 = vmatprep.mubr.bf16.mxu0 0
    %980 = vmatmul.mubr.bf16.gmra.mrb[0].mxu0 %v853
    %v981 = vpop.f32.mrb[0].mxu0
    %v982 = vadd.f32 %v874, %v981
    %v983 = vpop.f32.mrb[0].mxu0
    %v984 = vpop.f32.mrb[0].mxu0
    %v985 = vadd.f32 %v874, %v984
    %v986 = vpop.f32.mrb[0].mxu0
    %987 = vdwg.mxu0
    %v988 = vmax.f32 %v958, 0.0
    %v989 = vmax.f32 %v961, 0.0
    %v990 = vmax.f32 %v966, 0.0
    %v991 = vmax.f32 %v969, 0.0
    %v992 = vmax.f32 %v974, 0.0
    %v993 = vmax.f32 %v977, 0.0
    %v994 = vmax.f32 %v982, 0.0
    %v995 = vmax.f32 %v985, 0.0
    %v996 = vpack.c.bf16 %v989, %v988
    %v997 = vpack.c.bf16 %v991, %v990
    %v998 = vpack.c.bf16 %v993, %v992
    %v999 = vpack.c.bf16 %v995, %v994
    %s1000 = scalar_lea.vmem [#allocation7], 384
    %v1001 = vld [vmem:[%s1000] sm:$0xf]
    %v1002 = vld [vmem:[%s1000 + $0x4] sm:$0xf]
    %v1003 = vld [vmem:[%s1000 + $0x8] sm:$0xf]
    %v1004 = vld [vmem:[%s1000 + $0xc] sm:$0xf]
    %v1005 = vld [vmem:[%s1000 + $0x10] sm:$0xf]
    %v1006 = vld [vmem:[%s1000 + $0x14] sm:$0xf]
    %v1007 = vld [vmem:[%s1000 + $0x18] sm:$0xf]
    %v1008 = vld [vmem:[%s1000 + $0x1c] sm:$0xf]
    %v1009 = vld [vmem:[%s1000 + $0x20] sm:$0xf]
    %v1010 = vld [vmem:[%s1000 + $0x24] sm:$0xf]
    %v1011 = vld [vmem:[%s1000 + $0x28] sm:$0xf]
    %v1012 = vld [vmem:[%s1000 + $0x2c] sm:$0xf]
    %v1013 = vld [vmem:[%s1000 + $0x30] sm:$0xf]
    %v1014 = vld [vmem:[%s1000 + $0x34] sm:$0xf]
    %v1015 = vld [vmem:[%s1000 + $0x38] sm:$0xf]
    %v1016 = vld [vmem:[%s1000 + $0x3c] sm:$0xf]
    %v1017 = vlaneseq
    %v1018 = vshrl.u32 %v1017, 7
    %v1019 = vsub.s32 6, %v1018
    %v1020 = vrot.slane %v60, %v1019
    %v1037 = vunpack.c.l.b16 %v1001
    %v1038 = vunpack.c.l.b16 %v1002
    %v1039 = vunpack.c.l.b16 %v1003
    %v1040 = vunpack.c.l.b16 %v1004
    %v1041 = vunpack.c.l.b16 %v1005
    %v1042 = vunpack.c.l.b16 %v1006
    %v1043 = vunpack.c.l.b16 %v1007
    %v1044 = vunpack.c.l.b16 %v1008
    %v1045 = vunpack.c.l.b16 %v1009
    %v1046 = vunpack.c.l.b16 %v1010
    %v1047 = vunpack.c.l.b16 %v1011
    %v1048 = vunpack.c.l.b16 %v1012
    %v1049 = vunpack.c.l.b16 %v1013
    %v1050 = vunpack.c.l.b16 %v1014
    %v1051 = vunpack.c.l.b16 %v1015
    %v1052 = vunpack.c.l.b16 %v1016
    %v1053 = vpack.c.b16 %v1038, %v1037
    %v1054 = vpack.c.b16 %v1040, %v1039
    %v1055 = vpack.c.b16 %v1042, %v1041
    %v1056 = vpack.c.b16 %v1044, %v1043
    %v1057 = vpack.c.b16 %v1046, %v1045
    %v1058 = vpack.c.b16 %v1048, %v1047
    %v1059 = vpack.c.b16 %v1050, %v1049
    %v1060 = vpack.c.b16 %v1052, %v1051
    %1069 = vmatprep.subr.bf16.mxu0 0
    %1070 = vmatpush1.bf16.msra.mxu0 %v1053
    %1071 = vmatprep.subr.bf16.mxu0 0
    %1072 = vmatpush1.bf16.msra.mxu0 %v1054
    %1073 = vmatprep.subr.bf16.mxu0 0
    %1074 = vmatpush1.bf16.msra.mxu0 %v1055
    %1075 = vmatprep.subr.bf16.mxu0 0
    %1076 = vmatpush1.bf16.msra.mxu0 %v1056
    %1077 = vmatprep.subr.bf16.mxu0 0
    %1078 = vmatpush1.bf16.msra.mxu0 %v1057
    %1079 = vmatprep.subr.bf16.mxu0 0
    %1080 = vmatpush1.bf16.msra.mxu0 %v1058
    %1081 = vmatprep.subr.bf16.mxu0 0
    %1082 = vmatpush1.bf16.msra.mxu0 %v1059
    %1083 = vmatprep.subr.bf16.mxu0 0
    %1084 = vmatpush1.bf16.msra.mxu0 %v1060
    %1085 = vmatprep.subr.bf16.mxu0 0
    %1086 = vmatpush1.bf16.msra.mxu0 0
    %1087 = vmatprep.subr.bf16.mxu0 0
    %1088 = vmatpush1.bf16.msra.mxu0 0
    %1089 = vmatprep.subr.bf16.mxu0 0
    %1090 = vmatpush1.bf16.msra.mxu0 0
    %1091 = vmatprep.subr.bf16.mxu0 0
    %1092 = vmatpush1.bf16.msra.mxu0 0
    %1093 = vmatprep.subr.bf16.mxu0 0
    %1094 = vmatpush1.bf16.msra.mxu0 0
    %1095 = vmatprep.subr.bf16.mxu0 0
    %1096 = vmatpush1.bf16.msra.mxu0 0
    %1097 = vmatprep.subr.bf16.mxu0 0
    %1098 = vmatpush1.bf16.msra.mxu0 0
    %1099 = vmatprep.subr.bf16.mxu0 0
    %1100 = vmatpush1.bf16.msra.mxu0 0
    %1101 = vmatprep.mubr.bf16.mxu0 0
    %1102 = vmatmul.mubr.bf16.gmra.mrb[0].mxu0 %v996
    %v1103 = vpop.f32.mrb[0].mxu0
    %v1104 = vadd.f32 %v1020, %v1103
    %v1105 = vpop.f32.mrb[0].mxu0
    %v1106 = vpop.f32.mrb[0].mxu0
    %v1107 = vadd.f32 %v1020, %v1106
    %v1108 = vpop.f32.mrb[0].mxu0
    %1109 = vmatprep.mubr.bf16.mxu0 0
    %1110 = vmatmul.mubr.bf16.gmra.mrb[0].mxu0 %v997
    %v1111 = vpop.f32.mrb[0].mxu0
    %v1112 = vadd.f32 %v1020, %v1111
    %v1113 = vpop.f32.mrb[0].mxu0
    %v1114 = vpop.f32.mrb[0].mxu0
    %v1115 = vadd.f32 %v1020, %v1114
    %v1116 = vpop.f32.mrb[0].mxu0
    %1117 = vmatprep.mubr.bf16.mxu0 0
    %1118 = vmatmul.mubr.bf16.gmra.mrb[0].mxu0 %v998
    %v1119 = vpop.f32.mrb[0].mxu0
    %v1120 = vadd.f32 %v1020, %v1119
    %v1121 = vpop.f32.mrb[0].mxu0
    %v1122 = vpop.f32.mrb[0].mxu0
    %v1123 = vadd.f32 %v1020, %v1122
    %v1124 = vpop.f32.mrb[0].mxu0
    %1125 = vmatprep.mubr.bf16.mxu0 0
    %1126 = vmatmul.mubr.bf16.gmra.mrb[0].mxu0 %v999
    %v1127 = vpop.f32.mrb[0].mxu0
    %v1128 = vadd.f32 %v1020, %v1127
    %v1129 = vpop.f32.mrb[0].mxu0
    %v1130 = vpop.f32.mrb[0].mxu0
    %v1131 = vadd.f32 %v1020, %v1130
    %v1132 = vpop.f32.mrb[0].mxu0
    %1133 = vdwg.mxu0
    %v1134 = vmax.f32 %v1104, 0.0
    %v1135 = vmax.f32 %v1107, 0.0
    %v1136 = vmax.f32 %v1112, 0.0
    %v1137 = vmax.f32 %v1115, 0.0
    %v1138 = vmax.f32 %v1120, 0.0
    %v1139 = vmax.f32 %v1123, 0.0
    %v1140 = vmax.f32 %v1128, 0.0
    %v1141 = vmax.f32 %v1131, 0.0
    %v1142 = vpack.c.bf16 %v1135, %v1134
    %v1143 = vpack.c.bf16 %v1137, %v1136
    %v1144 = vpack.c.bf16 %v1139, %v1138
    %v1145 = vpack.c.bf16 %v1141, %v1140
    %s1146 = scalar_lea.vmem [#allocation7], 448
    %v1147 = vld [vmem:[%s1146] sm:$0xf]
    %v1148 = vld [vmem:[%s1146 + $0x4] sm:$0xf]
    %v1149 = vld [vmem:[%s1146 + $0x8] sm:$0xf]
    %v1150 = vld [vmem:[%s1146 + $0xc] sm:$0xf]
    %v1151 = vld [vmem:[%s1146 + $0x10] sm:$0xf]
    %v1152 = vld [vmem:[%s1146 + $0x14] sm:$0xf]
    %v1153 = vld [vmem:[%s1146 + $0x18] sm:$0xf]
    %v1154 = vld [vmem:[%s1146 + $0x1c] sm:$0xf]
    %v1155 = vld [vmem:[%s1146 + $0x20] sm:$0xf]
    %v1156 = vld [vmem:[%s1146 + $0x24] sm:$0xf]
    %v1157 = vld [vmem:[%s1146 + $0x28] sm:$0xf]
    %v1158 = vld [vmem:[%s1146 + $0x2c] sm:$0xf]
    %v1159 = vld [vmem:[%s1146 + $0x30] sm:$0xf]
    %v1160 = vld [vmem:[%s1146 + $0x34] sm:$0xf]
    %v1161 = vld [vmem:[%s1146 + $0x38] sm:$0xf]
    %v1162 = vld [vmem:[%s1146 + $0x3c] sm:$0xf]
    %v1163 = vlaneseq
    %v1164 = vshrl.u32 %v1163, 7
    %v1165 = vsub.s32 7, %v1164
    %v1166 = vrot.slane %v60, %v1165
    %v1183 = vunpack.c.l.b16 %v1147
    %v1184 = vunpack.c.l.b16 %v1148
    %v1185 = vunpack.c.l.b16 %v1149
    %v1186 = vunpack.c.l.b16 %v1150
    %v1187 = vunpack.c.l.b16 %v1151
    %v1188 = vunpack.c.l.b16 %v1152
    %v1189 = vunpack.c.l.b16 %v1153
    %v1190 = vunpack.c.l.b16 %v1154
    %v1191 = vunpack.c.l.b16 %v1155
    %v1192 = vunpack.c.l.b16 %v1156
    %v1193 = vunpack.c.l.b16 %v1157
    %v1194 = vunpack.c.l.b16 %v1158
    %v1195 = vunpack.c.l.b16 %v1159
    %v1196 = vunpack.c.l.b16 %v1160
    %v1197 = vunpack.c.l.b16 %v1161
    %v1198 = vunpack.c.l.b16 %v1162
    %v1199 = vpack.c.b16 %v1184, %v1183
    %v1200 = vpack.c.b16 %v1186, %v1185
    %v1201 = vpack.c.b16 %v1188, %v1187
    %v1202 = vpack.c.b16 %v1190, %v1189
    %v1203 = vpack.c.b16 %v1192, %v1191
    %v1204 = vpack.c.b16 %v1194, %v1193
    %v1205 = vpack.c.b16 %v1196, %v1195
    %v1206 = vpack.c.b16 %v1198, %v1197
    %1215 = vmatprep.subr.bf16.mxu0 0
    %1216 = vmatpush1.bf16.msra.mxu0 %v1199
    %1217 = vmatprep.subr.bf16.mxu0 0
    %1218 = vmatpush1.bf16.msra.mxu0 %v1200
    %1219 = vmatprep.subr.bf16.mxu0 0
    %1220 = vmatpush1.bf16.msra.mxu0 %v1201
    %1221 = vmatprep.subr.bf16.mxu0 0
    %1222 = vmatpush1.bf16.msra.mxu0 %v1202
    %1223 = vmatprep.subr.bf16.mxu0 0
    %1224 = vmatpush1.bf16.msra.mxu0 %v1203
    %1225 = vmatprep.subr.bf16.mxu0 0
    %1226 = vmatpush1.bf16.msra.mxu0 %v1204
    %1227 = vmatprep.subr.bf16.mxu0 0
    %1228 = vmatpush1.bf16.msra.mxu0 %v1205
    %1229 = vmatprep.subr.bf16.mxu0 0
    %1230 = vmatpush1.bf16.msra.mxu0 %v1206
    %1231 = vmatprep.subr.bf16.mxu0 0
    %1232 = vmatpush1.bf16.msra.mxu0 0
    %1233 = vmatprep.subr.bf16.mxu0 0
    %1234 = vmatpush1.bf16.msra.mxu0 0
    %1235 = vmatprep.subr.bf16.mxu0 0
    %1236 = vmatpush1.bf16.msra.mxu0 0
    %1237 = vmatprep.subr.bf16.mxu0 0
    %1238 = vmatpush1.bf16.msra.mxu0 0
    %1239 = vmatprep.subr.bf16.mxu0 0
    %1240 = vmatpush1.bf16.msra.mxu0 0
    %1241 = vmatprep.subr.bf16.mxu0 0
    %1242 = vmatpush1.bf16.msra.mxu0 0
    %1243 = vmatprep.subr.bf16.mxu0 0
    %1244 = vmatpush1.bf16.msra.mxu0 0
    %1245 = vmatprep.subr.bf16.mxu0 0
    %1246 = vmatpush1.bf16.msra.mxu0 0
    %1247 = vmatprep.mubr.bf16.mxu0 0
    %1248 = vmatmul.mubr.bf16.gmra.mrb[0].mxu0 %v1142
    %v1249 = vpop.f32.mrb[0].mxu0
    %v1250 = vadd.f32 %v1166, %v1249
    %v1251 = vpop.f32.mrb[0].mxu0
    %v1252 = vpop.f32.mrb[0].mxu0
    %v1253 = vadd.f32 %v1166, %v1252
    %v1254 = vpop.f32.mrb[0].mxu0
    %1255 = vmatprep.mubr.bf16.mxu0 0
    %1256 = vmatmul.mubr.bf16.gmra.mrb[0].mxu0 %v1143
    %v1257 = vpop.f32.mrb[0].mxu0
    %v1258 = vadd.f32 %v1166, %v1257
    %v1259 = vpop.f32.mrb[0].mxu0
    %v1260 = vpop.f32.mrb[0].mxu0
    %v1261 = vadd.f32 %v1166, %v1260
    %v1262 = vpop.f32.mrb[0].mxu0
    %1263 = vmatprep.mubr.bf16.mxu0 0
    %1264 = vmatmul.mubr.bf16.gmra.mrb[0].mxu0 %v1144
    %v1265 = vpop.f32.mrb[0].mxu0
    %v1266 = vadd.f32 %v1166, %v1265
    %v1267 = vpop.f32.mrb[0].mxu0
    %v1268 = vpop.f32.mrb[0].mxu0
    %v1269 = vadd.f32 %v1166, %v1268
    %v1270 = vpop.f32.mrb[0].mxu0
    %1271 = vmatprep.mubr.bf16.mxu0 0
    %1272 = vmatmul.mubr.bf16.gmra.mrb[0].mxu0 %v1145
    %v1273 = vpop.f32.mrb[0].mxu0
    %v1274 = vadd.f32 %v1166, %v1273
    %v1275 = vpop.f32.mrb[0].mxu0
    %v1276 = vpop.f32.mrb[0].mxu0
    %v1277 = vadd.f32 %v1166, %v1276
    %v1278 = vpop.f32.mrb[0].mxu0
    %1279 = vdwg.mxu0
    %1280 = vst [vmem:[#allocation8] sm:$0xff] %v1250
    %1281 = vst [vmem:[#allocation8 + $0x8] sm:$0xff] %v1253
    %1282 = vst [vmem:[#allocation8 + $0x10] sm:$0xff] %v1258
    %1283 = vst [vmem:[#allocation8 + $0x18] sm:$0xff] %v1261
    %1284 = vst [vmem:[#allocation8 + $0x20] sm:$0xff] %v1266
    %1285 = vst [vmem:[#allocation8 + $0x28] sm:$0xff] %v1269
    %1286 = vst [vmem:[#allocation8 + $0x30] sm:$0xff] %v1274
    %1287 = vst [vmem:[#allocation8 + $0x38] sm:$0xff] %v1277
    // Predicated region
    $region30: #{tpu_custom_call.1} parent=1 // pred_check
      _
    $region31: #{tpu_custom_call.1} parent=1 // pred_check_branch
      %1289 = sbr.rel (0) target = $region33
    $region32: #{tpu_custom_call.1} parent=1 // pred_region
      %s1291 = ssub.s32 1024, 1024
      %1292 = vsyncadd [#allocation4], %s1291
      %s1293 = sshll.u32 [#allocation8], 4
      %s1294 = int_to_ptr.vmem [resolvable:$true] %s1293
      %1299 = dma.vmem_to_hbm [thread:$0]  %s1294, 1024, %s4, [#allocation4], 128, 128, 8
    $region33: #{tpu_custom_call.1} parent=1 // pred_fallthru
      _
    // Predicated region
    $region34: #{tpu_custom_call.1} parent=1 // pred_check
      _
    $region35: #{tpu_custom_call.1} parent=1 // pred_check_branch
      %1301 = sbr.rel (0) target = $region37
    $region36: #{tpu_custom_call.1} parent=1 // pred_region
      %1302 = dma.done [#allocation4], 1024
    $region37: #{tpu_custom_call.1} parent=1 // pred_fallthru
      _
    %1303 = vsyncpa [#allocation3], 1
    %1304 = vsyncpa [#allocation6], 1
    %1305 = vsyncpa [#allocation4], 1

</llo_original>
